<compile_context>
chip_gen: v5e
topology: v5e:2x2
jax: 0.10.0
libtpu: 0.0.40
codegen_flags: <defaults>
</compile_context>

<pallas_src>
import jax
import jax.numpy as jnp
from jax.experimental import pallas as pl
from jax.experimental.pallas import tpu as pltpu

_LANES = 128                          # TPU lane width (lane-dense last dim)
_TARGET_BLOCK_BYTES = 4 * 1024 * 1024 # per-block size for the materialized copy


# ---------------------------------------------------------------------------
# Primary path: zero-traffic identity (aliased output, no-op body).
# ---------------------------------------------------------------------------
def _identity_alias_kernel(x_ref, o_ref):
    # Output buffer is aliased to the input buffer (input_output_aliases={0:0})
    # and both stay in HBM (pl.ANY), so the data is already in place.
    del x_ref, o_ref  # intentional no-op


def identity_pallas(x):
    """y = x with zero kernel data movement (aliased output buffer)."""
    return pl.pallas_call(
        _identity_alias_kernel,
        out_shape=jax.ShapeDtypeStruct(x.shape, x.dtype),
        in_specs=[pl.BlockSpec(memory_space=pl.ANY)],
        out_specs=pl.BlockSpec(memory_space=pl.ANY),
        input_output_aliases={0: 0},
        cost_estimate=pl.CostEstimate(flops=0, transcendentals=0,
                                      bytes_accessed=0),
    )(x)


# ---------------------------------------------------------------------------
# Secondary path: materialized copy (only if a fresh buffer is required).
# ---------------------------------------------------------------------------
def _copy_kernel(x_ref, o_ref):
    o_ref[...] = x_ref[...]


def identity_copy_pallas(x):
    """y = x as a tiled, software-pipelined HBM->VMEM->HBM copy."""
    orig_shape, orig_dtype = x.shape, x.dtype
    total = x.size
    itemsize = jnp.dtype(orig_dtype).itemsize

    flat = x.reshape(-1)
    padded = (total % _LANES) != 0
    if padded:
        # Pad only to the next (8, 128) tile — not up to a tile_rows multiple.
        total_pad = pl.cdiv(total, 8 * _LANES) * 8 * _LANES
        flat = jnp.pad(flat, (0, total_pad - total))
    rows = flat.size // _LANES
    x2d = flat.reshape(rows, _LANES)

    # Block sizing: ~4 MiB blocks, sublane (8) aligned, aim for >= 4 tiles so
    # v7x's two TensorCores both participate; partial edge blocks are masked.
    max_rows_by_bytes = max(8, (_TARGET_BLOCK_BYTES // (_LANES * itemsize)) // 8 * 8)
    rows8 = pl.cdiv(rows, 8) * 8
    target = pl.cdiv(pl.cdiv(rows, 4), 8) * 8
    tile_rows = max(8, min(max_rows_by_bytes, max(target, 8), rows8))
    grid = (pl.cdiv(rows, tile_rows),)

    out2d = pl.pallas_call(
        _copy_kernel,
        out_shape=jax.ShapeDtypeStruct((rows, _LANES), orig_dtype),
        grid=grid,
        in_specs=[pl.BlockSpec((tile_rows, _LANES), lambda i: (i, 0))],
        out_specs=pl.BlockSpec((tile_rows, _LANES), lambda i: (i, 0)),
        compiler_params=pltpu.CompilerParams(
            dimension_semantics=("parallel",),
            vmem_limit_bytes=32 * 1024 * 1024,
        ),
        cost_estimate=pl.CostEstimate(
            flops=0,
            transcendentals=0,
            bytes_accessed=2 * rows * _LANES * itemsize,
        ),
    )(x2d)

    out_flat = out2d.reshape(-1)
    if padded:
        out_flat = out_flat[:total]
    return out_flat.reshape(orig_shape)


if __name__ == "__main__":
    key = jax.random.PRNGKey(0)
    k1, k2, k3 = jax.random.split(key, 3)

    # Small shape consistent with the module's usage (any tensor passes through).
    x = jax.random.normal(k1, (2, 4, 16, 16), jnp.float32)
    y = jax.block_until_ready(identity_pallas(x))
    assert y.shape == x.shape and y.dtype == x.dtype
    assert jnp.array_equal(y, x), "identity mismatch (aliased, f32)"

    # Larger bf16 tensor: exercises the multi-tile, parallel-grid copy path.
    x2 = jax.random.normal(k2, (4, 8, 64, 128), jnp.bfloat16)
    y2 = jax.block_until_ready(identity_copy_pallas(x2))
    assert y2.shape == x2.shape and y2.dtype == x2.dtype
    assert jnp.array_equal(y2, x2), "identity mismatch (copy, bf16, tiled)"

    # Ragged element count: pad-and-slice branch of the copy path.
    x3 = jax.random.normal(k3, (3, 5, 7), jnp.float32)
    y3 = jax.block_until_ready(identity_copy_pallas(x3))
    assert jnp.array_equal(y3, x3), "identity mismatch (copy, ragged)"

    # Aliased path is shape-agnostic; check it on the ragged tensor too.
    y4 = jax.block_until_ready(identity_pallas(x3))
    assert jnp.array_equal(y4, x3), "identity mismatch (aliased, ragged)"

    print("KERNEL_OK")
</pallas_src>

<mosaic_0001>
module attributes {stable_mosaic.version = 11 : i64} {
  func.func @_identity_alias_kernel(%arg0: memref<2x4x16x16xf32, #tpu.memory_space<any>>, %arg1: memref<2x4x16x16xf32, #tpu.memory_space<any>>) attributes {dimension_semantics = [], scalar_prefetch = 0 : i64, scratch_operands = 0 : i64, tpu.core_type = #tpu.core_type<tc>} {
    return
  }
}

</mosaic_0001>

<llo_original>
// kernel: tpu_custom_call.1
$region0: #{tpu_custom_call.1}
  #allocation0 [shape = 'u32[]', space=smem, size = 0x4, offset = 0x4, fixed_abs, tag = 'smem constant byte address 0x4 - core index']
  #allocation1 [shape = 'u32[72,128]{1,0:T(1,128)}', space=vmem, size = 0x9000, scoped, tag = 'internal scratch']
  %s0 = inlined_call_operand.hbm [shape: f32[2,4,16,16], index: 0, kind: input, shape index: {}, may-alias: {0,1}]
  %s1 = inlined_call_operand.hbm [shape: f32[2,4,16,16], index: 1, kind: output, shape index: {}, may-alias: {0,1}]
  %s2 = sld [smem:[#allocation0]]
  $region2: #{tpu_custom_call.1} parent=0
    _
  %s4 = ssub.s32 1, %s2
  %s5 = scalar_select 0, %s4, %s2

</llo_original>
